<compile_context>
chip_gen: v6e
topology: v6e:2x2x1
jax: 0.10.0
libtpu: 0.0.40
codegen_flags: <defaults>
</compile_context>

<pallas_src>
import functools
import math

import jax
import jax.numpy as jnp
from jax import lax
from jax.experimental import pallas as pl
from jax.experimental.pallas import tpu as pltpu

EPS = 1e-07


def _nce_partial_kernel(x_ref, o_ref, *, c, sub_out,
                        last_i, rows_last, last_j, cols_last):
    """Per-block partial sums of log(x + c).

    x_ref: (tr, tc) block of x, native dtype (upcast to f32 in-kernel).
    o_ref: (1, 1, sub_out, tc) f32 partial sums for this grid block.
    rows_last / cols_last: number of valid rows / cols in the last row / col
    block, or None when that edge block is full (no masking on that axis).
    """
    tr, tc = x_ref.shape

    x = x_ref[...].astype(jnp.float32)
    term = jnp.log(x + c)                       # the only per-element math

    def _row_reduce(vals):
        # Collapse rows down to `sub_out` sublanes with pure VPU vreg adds
        # (row-major reshape over the leading axis is layout-preserving);
        # everything else is deferred to the wrapper's jnp.sum.
        if sub_out == 8:
            return vals.reshape(tr // 8, 8, tc).sum(axis=0)
        return vals.sum(axis=0, keepdims=True)

    need_row_mask = rows_last is not None
    need_col_mask = cols_last is not None

    if not (need_row_mask or need_col_mask):
        o_ref[...] = _row_reduce(term)[None, None]
        return

    i = pl.program_id(0)
    j = pl.program_id(1)

    conds = []
    if need_row_mask:
        conds.append(i == last_i)
    if need_col_mask:
        conds.append(j == last_j)
    edge = conds[0]
    for cnd in conds[1:]:
        edge = jnp.logical_or(edge, cnd)

    @pl.when(jnp.logical_not(edge))
    def _steady():
        o_ref[...] = _row_reduce(term)[None, None]

    @pl.when(edge)
    def _edge():
        # The out-of-bounds region of an edge block holds unspecified data
        # (may be NaN/Inf after the log); zero it with a select before
        # reducing.  select does not propagate NaN from the unselected side.
        masks = []
        if need_row_mask:
            rlim = jnp.where(i == last_i, rows_last, tr)
            masks.append(lax.broadcasted_iota(jnp.int32, term.shape, 0) < rlim)
        if need_col_mask:
            clim = jnp.where(j == last_j, cols_last, tc)
            masks.append(lax.broadcasted_iota(jnp.int32, term.shape, 1) < clim)
        mask = masks[0]
        for mk in masks[1:]:
            mask = jnp.logical_and(mask, mk)
        o_ref[...] = _row_reduce(jnp.where(mask, term, 0.0))[None, None]


def nce_criterion(x, n_data, *, target_block_bytes=4 * 1024 * 1024):
    """Pallas implementation of NCECriterion(n_data).forward(x).

    x: (bsz, K+1) or (bsz, K+1, 1); column 0 = positive, columns 1..K = negatives.
    Returns: (1,) float32 loss (matches the PyTorch module's output shape).
    """
    if x.ndim == 3 and x.shape[-1] == 1:
        x = x[..., 0]
    if x.ndim != 2:
        raise ValueError(f"expected (bsz, K+1[, 1]) input, got shape {x.shape}")
    bsz, n = x.shape
    m = n - 1
    Pn = 1.0 / float(n_data)
    m_pn = float(m) * Pn
    c = m_pn + EPS

    # ---- tiling (native layout, no pad/reshape copy) -----------------------
    itemsize = jnp.dtype(x.dtype).itemsize
    target_elems = max(1024, target_block_bytes // itemsize)

    cap_c = 2048                        # lane-dim tile cap (multiple of 128)
    tc = n if n <= cap_c else cap_c     # either the full dim, or a 128-multiple
    tr_cap = max(8, (target_elems // tc) // 8 * 8)
    tr = bsz if bsz <= tr_cap else tr_cap   # either the full dim, or an 8-multiple

    row_blocks = pl.cdiv(bsz, tr)
    col_blocks = pl.cdiv(n, tc)

    rows_last = bsz - (row_blocks - 1) * tr
    cols_last = n - (col_blocks - 1) * tc
    rows_last = None if rows_last == tr else rows_last
    cols_last = None if cols_last == tc else cols_last

    sub_out = 8 if tr % 8 == 0 else 1

    kernel = functools.partial(
        _nce_partial_kernel, c=c, sub_out=sub_out,
        last_i=row_blocks - 1, rows_last=rows_last,
        last_j=col_blocks - 1, cols_last=cols_last)

    partials = pl.pallas_call(
        kernel,
        out_shape=jax.ShapeDtypeStruct(
            (row_blocks, col_blocks, sub_out, tc), jnp.float32),
        grid_spec=pltpu.PrefetchScalarGridSpec(
            num_scalar_prefetch=0,
            grid=(row_blocks, col_blocks),
            in_specs=[pl.BlockSpec((tr, tc), lambda i, j: (i, j))],
            out_specs=pl.BlockSpec((1, 1, sub_out, tc),
                                   lambda i, j: (i, j, 0, 0)),
        ),
        compiler_params=pltpu.CompilerParams(
            dimension_semantics=("parallel", "parallel"),  # megacore-friendly
            vmem_limit_bytes=32 * 1024 * 1024,
        ),
    )(x)

    # S = sum over every element of log(x + c)  (computed by the kernel).
    s = jnp.sum(partials)
    # Positive-column correction (bsz logs) + constant numerator term, done in
    # plain JAX — negligible next to the bsz*(K+1)-element main pass.
    pos_sum = jnp.sum(jnp.log(x[:, 0].astype(jnp.float32)))
    const = float(bsz) * float(m) * math.log(m_pn) if m > 0 else 0.0
    loss = -(pos_sum + const - s) / float(bsz)
    return loss.astype(jnp.float32).reshape(1)


def _reference(x, n_data):
    # Pure-JAX reference mirroring the PyTorch NCECriterion code exactly.
    if x.ndim == 3 and x.shape[-1] == 1:
        x = x[..., 0]
    x = x.astype(jnp.float32)
    bsz, n = x.shape
    m = n - 1
    Pn = 1.0 / float(n_data)
    p_pos = x[:, 0]
    log_d1 = jnp.log(p_pos / (p_pos + m * Pn + EPS))
    p_neg = x[:, 1:]
    log_d0 = jnp.log((m * Pn) / (p_neg + m * Pn + EPS))
    return (-(jnp.sum(log_d1) + jnp.sum(log_d0)) / bsz).reshape(1)


if __name__ == "__main__":
    n_data = 1000
    k1, k2, k3, k4, k5 = jax.random.split(jax.random.PRNGKey(0), 5)

    # 1) Canonical small case: (bsz, K+1) f32 — single block, no masking.
    x1 = jax.random.uniform(k1, (8, 17), dtype=jnp.float32,
                            minval=1e-4, maxval=1.0)
    out1 = jax.block_until_ready(nce_criterion(x1, n_data))
    ref1 = _reference(x1, n_data)
    assert jnp.allclose(out1, ref1, rtol=1e-4, atol=1e-4), (out1, ref1)

    # 2) bf16 input with trailing singleton dim (native-dtype load path).
    x2 = jax.random.uniform(k2, (8, 17), dtype=jnp.float32,
                            minval=1e-4, maxval=1.0).astype(jnp.bfloat16)[..., None]
    out2 = jax.block_until_ready(nce_criterion(x2, n_data))
    ref2 = _reference(x2, n_data)
    assert jnp.allclose(out2, ref2, rtol=1e-3, atol=1e-3), (out2, ref2)

    # 3) Multiple row blocks with a partial (masked) last row block.
    x3 = jax.random.uniform(k3, (64, 300), dtype=jnp.float32,
                            minval=1e-4, maxval=1.0)
    out3 = jax.block_until_ready(
        nce_criterion(x3, n_data, target_block_bytes=64 * 1024))
    ref3 = _reference(x3, n_data)
    assert jnp.allclose(out3, ref3, rtol=1e-4, atol=1e-4), (out3, ref3)

    # 4) Multiple column blocks with a partial (masked) last column block.
    x4 = jax.random.uniform(k4, (12, 2600), dtype=jnp.float32,
                            minval=1e-4, maxval=1.0)
    out4 = jax.block_until_ready(nce_criterion(x4, n_data))
    ref4 = _reference(x4, n_data)
    assert jnp.allclose(out4, ref4, rtol=1e-4, atol=1e-4), (out4, ref4)

    # 5) Both row- and column-edge masking active simultaneously.
    x5 = jax.random.uniform(k5, (61, 2600), dtype=jnp.float32,
                            minval=1e-4, maxval=1.0)
    out5 = jax.block_until_ready(
        nce_criterion(x5, n_data, target_block_bytes=64 * 1024))
    ref5 = _reference(x5, n_data)
    assert jnp.allclose(out5, ref5, rtol=1e-4, atol=1e-4), (out5, ref5)

    print("KERNEL_OK")
</pallas_src>

<mosaic_0001>
module attributes {stable_mosaic.version = 11 : i64} {
  func.func @_nce_partial_kernel(%arg0: i32, %arg1: i32, %arg2: memref<8x17xf32, #tpu.memory_space<vmem>>, %arg3: memref<1x1x8x17xf32, #tpu.memory_space<vmem>>) attributes {dimension_semantics = [#tpu.dimension_semantics<parallel>, #tpu.dimension_semantics<parallel>], iteration_bounds = array<i64: 1, 1>, scalar_prefetch = 0 : i64, scratch_operands = 0 : i64, tpu.core_type = #tpu.core_type<tc>, window_params = [{transform_indices = @transform_0, window_bounds = array<i64: 8, 17>}, {transform_indices = @transform_1, window_bounds = array<i64: 1, 1, 8, 17>}]} {
    %c0 = arith.constant 0 : index
    %c0_0 = arith.constant 0 : index
    %0 = vector.load %arg2[%c0, %c0_0] : memref<8x17xf32, #tpu.memory_space<vmem>>, vector<8x17xf32>
    %cst = arith.constant 1.600010e-02 : f32
    %1 = vector.broadcast %cst : f32 to vector<8x17xf32>
    %2 = arith.addf %0, %1 : vector<8x17xf32>
    %3 = math.log %2 : vector<8x17xf32>
    %4 = vector.shape_cast %3 : vector<8x17xf32> to vector<1x8x17xf32>
    %cst_1 = arith.constant dense<0.000000e+00> : vector<8x17xf32>
    %5 = vector.multi_reduction <add>, %4, %cst_1 [0] : vector<1x8x17xf32> to vector<8x17xf32>
    %6 = vector.shape_cast %5 : vector<8x17xf32> to vector<1x1x8x17xf32>
    %c0_2 = arith.constant 0 : index
    %c0_3 = arith.constant 0 : index
    %c0_4 = arith.constant 0 : index
    %c0_5 = arith.constant 0 : index
    %7 = vector.load %arg3[%c0_2, %c0_3, %c0_4, %c0_5] : memref<1x1x8x17xf32, #tpu.memory_space<vmem>>, vector<1x1x8x17xf32>
    tpu.vector_store %arg3[%c0_2, %c0_3, %c0_4, %c0_5], %6 {strides = array<i32>} : memref<1x1x8x17xf32, #tpu.memory_space<vmem>>, vector<1x1x8x17xf32>,
    return
  }
  func.func @transform_0(%arg0: i32, %arg1: i32) -> (i32, i32) {
    %c0_i32 = arith.constant 0 : i32
    return %arg0, %arg1 : i32, i32
  }
  func.func @transform_1(%arg0: i32, %arg1: i32) -> (i32, i32, i32, i32) {
    %c0_i32 = arith.constant 0 : i32
    %c0_i32_0 = arith.constant 0 : i32
    %c0_i32_1 = arith.constant 0 : i32
    return %arg0, %arg1, %c0_i32, %c0_i32_0 : i32, i32, i32, i32
  }
}

</mosaic_0001>

<llo_original>
// kernel: tpu_custom_call.1
$region0: #{tpu_custom_call.1}
  #allocation0 [shape = 'u32[]', space=smem, size = 0x4, offset = 0x4, fixed_abs, tag = 'smem constant byte address 0x4 - core index']
  #allocation1 [shape = 'u32[144,128]{1,0:T(1,128)}', space=vmem, size = 0x12000, scoped, tag = 'internal scratch']
  %s0 = inlined_call_operand.hbm [shape: f32[8,17], index: 0, kind: input, shape index: {}]
  %s1 = inlined_call_operand.hbm [shape: f32[1,1,8,17], index: 1, kind: output, shape index: {}]
  %s2 = sld [smem:[#allocation0]]
  $region18: #{tpu_custom_call.1} parent=0
    _
  %s4 = ssub.s32 1, %s2
  %s5 = scalar_select 0, %s4, %s2
  $region1: #{tpu_custom_call.1} parent=0
    #allocation2 [shape = 'u8[4096]{0}', space=vmem, size = 0x1000, scoped, tag = 'input window, operand 0, single buffered']
    #allocation3 [shape = 's32[1]{0}', space=sflag, size = 0x4, scoped, tag = 'scoped memory for tpu_custom_call.1']
    #allocation4 [shape = 's32[1]{0}', space=sflag, size = 0x4, scoped, tag = 'scoped memory for tpu_custom_call.1']
    #allocation5 [shape = 'u8[4096]{0}', space=vmem, size = 0x1000, scoped, tag = 'output window, operand 0, single buffered']
    %6 = vsyncpa [#allocation3], 0
    %7 = vsyncpa [#allocation4], 0
    // Predicated region
    $region2: #{tpu_custom_call.1} parent=1 // pred_check
      _
    $region3: #{tpu_custom_call.1} parent=1 // pred_check_branch
      %9 = sbr.rel (0) target = $region5
    $region4: #{tpu_custom_call.1} parent=1 // pred_region
      %s11 = ssub.s32 128, 128
      %12 = vsyncadd [#allocation3], %s11
      %s14 = sshll.u32 [#allocation2], 4
      %s15 = int_to_ptr.vmem [resolvable:$true] %s14
      %17 = dma.hbm_to_vmem [thread:$0]  %s0, 128, %s15, [#allocation3]
    $region5: #{tpu_custom_call.1} parent=1 // pred_fallthru
      _
    // Predicated region
    $region6: #{tpu_custom_call.1} parent=1 // pred_check
      _
    $region7: #{tpu_custom_call.1} parent=1 // pred_check_branch
      %19 = sbr.rel (0) target = $region9
    $region8: #{tpu_custom_call.1} parent=1 // pred_region
      %20 = dma.done [#allocation3], 128
    $region9: #{tpu_custom_call.1} parent=1 // pred_fallthru
      _
    %v21 = vld [vmem:[#allocation2] sm:$0xff]
    %v22 = vadd.f32 %v21, 0.0160001
    %v23 = vlog2.pop %v22
    %v24 = vmul.f32 %v23, 0.6931472
    %v25 = vadd.f32 %v24, 0.0
    %vm26 = vcmask 138240
    %27 = vst.msk [vmem:[#allocation5] sm:$0xff] %vm26, %v25
    // Predicated region
    $region10: #{tpu_custom_call.1} parent=1 // pred_check
      _
    $region11: #{tpu_custom_call.1} parent=1 // pred_check_branch
      %29 = sbr.rel (0) target = $region13
    $region12: #{tpu_custom_call.1} parent=1 // pred_region
      %s31 = ssub.s32 128, 128
      %32 = vsyncadd [#allocation4], %s31
      %s34 = sshll.u32 [#allocation5], 4
      %s35 = int_to_ptr.vmem [resolvable:$true] %s34
      %37 = dma.vmem_to_hbm [thread:$0]  %s35, 128, %s1, [#allocation4]
    $region13: #{tpu_custom_call.1} parent=1 // pred_fallthru
      _
    // Predicated region
    $region14: #{tpu_custom_call.1} parent=1 // pred_check
      _
    $region15: #{tpu_custom_call.1} parent=1 // pred_check_branch
      %39 = sbr.rel (0) target = $region17
    $region16: #{tpu_custom_call.1} parent=1 // pred_region
      %40 = dma.done [#allocation4], 128
    $region17: #{tpu_custom_call.1} parent=1 // pred_fallthru
      _
    %41 = vsyncpa [#allocation3], 1
    %42 = vsyncpa [#allocation4], 1

</llo_original>
